<compile_context>
chip_gen: v7x
topology: tpu7x:2x2x1
jax: 0.10.0
libtpu: 0.0.40
codegen_flags: <defaults>
</compile_context>

<pallas_src>
import functools

import jax
import jax.numpy as jnp
from jax.experimental import pallas as pl
from jax.experimental.pallas import tpu as pltpu


def policy_net_kernel(x_ref, w1_ref, b1_ref, w2_ref, b2_ref, o_ref, *, n_actions):
    # Hidden layer: Linear(state -> hidden) + ReLU   (MXU matmul, VPU relu)
    h = jnp.dot(x_ref[...], w1_ref[...], preferred_element_type=jnp.float32)
    h = jnp.maximum(h + b1_ref[...], 0.0)            # b1 is (1, H), broadcasts

    # Output layer: Linear(hidden -> A_pad lanes). Padded lanes have zero
    # weight columns and a -1e30 bias, so exp() underflows them to exactly 0.
    logits = jnp.dot(h, w2_ref[...], preferred_element_type=jnp.float32)
    logits = logits + b2_ref[...]                     # b2 is (1, A_pad)

    # Numerically-stable softmax over the (lane-dense, padded) action axis.
    m = jnp.max(logits, axis=-1, keepdims=True)
    e = jnp.exp(logits - m)
    denom = jnp.sum(e, axis=-1, keepdims=True)
    probs = e[:, :n_actions] / denom                  # exact divide (sum == 1)
    o_ref[...] = probs.astype(o_ref.dtype)            # store only real lanes


def prepare_params(w1, b1, w2, b2):
    """One-time parameter prep (run once per policy update, not per forward).

    Pads W2/b2 to a full 128-lane action block so the in-kernel softmax
    reductions run on a lane-dense tile; padded lanes get -1e30 bias.
    """
    S, H = w1.shape
    A = w2.shape[1]
    A_pad = 128 * pl.cdiv(A, 128)
    w1_f = w1.astype(jnp.float32)
    b1_2d = b1.reshape(1, H).astype(jnp.float32)
    w2_p = jnp.zeros((H, A_pad), jnp.float32).at[:, :A].set(w2.astype(jnp.float32))
    b2_p = jnp.full((1, A_pad), -1e30, jnp.float32).at[0, :A].set(
        b2.astype(jnp.float32))
    return (w1_f, b1_2d, w2_p, b2_p, A)


@functools.partial(jax.jit, static_argnames=("n_actions", "block_b"))
def _policy_net_forward(x, w1, b1_2d, w2_p, b2_p, *, n_actions, block_b):
    B, S = x.shape
    H = w1.shape[1]
    A_pad = w2_p.shape[1]

    # Batch tiling: one grid step for any batch up to block_b rows (the demo
    # batch of 256 runs in a single step).  BM stays a multiple of 8 (f32
    # sublane); larger rollout batches split into block_b-row tiles, which
    # the "parallel" axis lets v7x megacore shard across TensorCores.
    BM = min(block_b, 8 * pl.cdiv(B, 8))
    B_pad = BM * pl.cdiv(B, BM)
    if B_pad != B:
        x = jnp.pad(x, ((0, B_pad - B), (0, 0)))

    kernel = functools.partial(policy_net_kernel, n_actions=n_actions)
    out = pl.pallas_call(
        kernel,
        out_shape=jax.ShapeDtypeStruct((B_pad, n_actions), jnp.float32),
        grid=(B_pad // BM,),
        in_specs=[
            pl.BlockSpec((BM, S), lambda i: (i, 0)),      # x rows for this tile
            pl.BlockSpec((S, H), lambda i: (0, 0)),       # W1 (resident)
            pl.BlockSpec((1, H), lambda i: (0, 0)),       # b1
            pl.BlockSpec((H, A_pad), lambda i: (0, 0)),   # W2 (lane-padded)
            pl.BlockSpec((1, A_pad), lambda i: (0, 0)),   # b2 (lane-padded)
        ],
        out_specs=pl.BlockSpec((BM, n_actions), lambda i: (i, 0)),
        compiler_params=pltpu.CompilerParams(
            dimension_semantics=("parallel",)),           # only matters at large B
    )(x, w1, b1_2d, w2_p, b2_p)

    return out[:B]


def policy_net_forward(x, prepped_params, *, block_b=1024):
    """x: (B, S) float32 -> (B, A) float32 action probabilities."""
    w1, b1_2d, w2_p, b2_p, n_actions = prepped_params
    return _policy_net_forward(x, w1, b1_2d, w2_p, b2_p,
                               n_actions=n_actions, block_b=block_b)


def init_params(key, state_space, hidden_space, action_space):
    """Deterministic init mimicking torch.nn.Linear's U(-1/sqrt(fan_in), +)."""
    k1, k2, k3, k4 = jax.random.split(key, 4)
    bound1 = 1.0 / jnp.sqrt(state_space)
    bound2 = 1.0 / jnp.sqrt(hidden_space)
    w1 = jax.random.uniform(k1, (state_space, hidden_space), jnp.float32,
                            -bound1, bound1)
    b1 = jax.random.uniform(k2, (hidden_space,), jnp.float32, -bound1, bound1)
    w2 = jax.random.uniform(k3, (hidden_space, action_space), jnp.float32,
                            -bound2, bound2)
    b2 = jax.random.uniform(k4, (action_space,), jnp.float32, -bound2, bound2)
    return w1, b1, w2, b2


if __name__ == "__main__":
    # CartPole-v1: state_space=4, action_space=2, hidden_space=128.
    # Batch = 256 rollout states -> one grid step, sublanes filled.
    state_space = 4
    hidden_space = 128
    action_space = 2
    batch = 256

    key = jax.random.PRNGKey(0)
    kx, kp = jax.random.split(key)
    x = jax.random.normal(kx, (batch, state_space), jnp.float32)
    w1, b1, w2, b2 = init_params(kp, state_space, hidden_space, action_space)

    # One-time param prep (cached between policy updates in a real PG loop).
    prepped = prepare_params(w1, b1, w2, b2)

    probs = policy_net_forward(x, prepped)
    probs = jax.block_until_ready(probs)

    # Sanity check vs. pure-JAX reference.
    h_ref = jnp.maximum(x @ w1 + b1, 0.0)
    logits_ref = h_ref @ w2 + b2
    probs_ref = jax.nn.softmax(logits_ref, axis=1)
    assert probs.shape == (batch, action_space)
    assert jnp.allclose(probs, probs_ref, atol=2e-3, rtol=2e-3), \
        "mismatch vs reference"
    assert jnp.allclose(jnp.sum(probs, axis=1), 1.0, atol=1e-4)

    print("KERNEL_OK")
</pallas_src>

<mosaic_0001>
module attributes {stable_mosaic.version = 11 : i64} {
  func.func @policy_net_kernel(%arg0: i32, %arg1: memref<256x4xf32, #tpu.memory_space<vmem>>, %arg2: memref<4x128xf32, #tpu.memory_space<vmem>>, %arg3: memref<1x128xf32, #tpu.memory_space<vmem>>, %arg4: memref<128x128xf32, #tpu.memory_space<vmem>>, %arg5: memref<1x128xf32, #tpu.memory_space<vmem>>, %arg6: memref<256x2xf32, #tpu.memory_space<vmem>>) attributes {dimension_semantics = [#tpu.dimension_semantics<parallel>], iteration_bounds = array<i64: 1>, scalar_prefetch = 0 : i64, scratch_operands = 0 : i64, tpu.core_type = #tpu.core_type<tc>, window_params = [{transform_indices = @transform_0, window_bounds = array<i64: 256, 4>}, {pipeline_mode = #tpu.pipeline_mode<synchronous>, transform_indices = @transform_1, window_bounds = array<i64: 4, 128>}, {pipeline_mode = #tpu.pipeline_mode<synchronous>, transform_indices = @transform_2, window_bounds = array<i64: 1, 128>}, {pipeline_mode = #tpu.pipeline_mode<synchronous>, transform_indices = @transform_3, window_bounds = array<i64: 128, 128>}, {pipeline_mode = #tpu.pipeline_mode<synchronous>, transform_indices = @transform_4, window_bounds = array<i64: 1, 128>}, {transform_indices = @transform_5, window_bounds = array<i64: 256, 2>}]} {
    %c0 = arith.constant 0 : index
    %c0_0 = arith.constant 0 : index
    %0 = vector.load %arg1[%c0, %c0_0] : memref<256x4xf32, #tpu.memory_space<vmem>>, vector<256x4xf32>
    %c0_1 = arith.constant 0 : index
    %c0_2 = arith.constant 0 : index
    %1 = vector.load %arg2[%c0_1, %c0_2] : memref<4x128xf32, #tpu.memory_space<vmem>>, vector<4x128xf32>
    %cst = arith.constant dense<0.000000e+00> : vector<256x128xf32>
    %2 = tpu.matmul %0, %1, %cst {dimension_numbers = #tpu.dot_dimension_numbers<[1], [0], [0], [1], [0, 0, 1, 1], [], []>} : vector<256x4xf32>, vector<4x128xf32>, vector<256x128xf32> -> vector<256x128xf32>
    %c0_3 = arith.constant 0 : index
    %c0_4 = arith.constant 0 : index
    %3 = vector.load %arg3[%c0_3, %c0_4] : memref<1x128xf32, #tpu.memory_space<vmem>>, vector<1x128xf32>
    %4 = vector.broadcast %3 : vector<1x128xf32> to vector<256x128xf32>
    %5 = arith.addf %2, %4 : vector<256x128xf32>
    %cst_5 = arith.constant 0.000000e+00 : f32
    %6 = vector.broadcast %cst_5 : f32 to vector<256x128xf32>
    %7 = arith.maximumf %5, %6 : vector<256x128xf32>
    %c0_6 = arith.constant 0 : index
    %c0_7 = arith.constant 0 : index
    %8 = vector.load %arg4[%c0_6, %c0_7] : memref<128x128xf32, #tpu.memory_space<vmem>>, vector<128x128xf32>
    %cst_8 = arith.constant dense<0.000000e+00> : vector<256x128xf32>
    %9 = tpu.matmul %7, %8, %cst_8 {dimension_numbers = #tpu.dot_dimension_numbers<[1], [0], [0], [1], [0, 0, 1, 1], [], []>} : vector<256x128xf32>, vector<128x128xf32>, vector<256x128xf32> -> vector<256x128xf32>
    %c0_9 = arith.constant 0 : index
    %c0_10 = arith.constant 0 : index
    %10 = vector.load %arg5[%c0_9, %c0_10] : memref<1x128xf32, #tpu.memory_space<vmem>>, vector<1x128xf32>
    %11 = vector.broadcast %10 : vector<1x128xf32> to vector<256x128xf32>
    %12 = arith.addf %9, %11 : vector<256x128xf32>
    %cst_11 = arith.constant dense<0xFF800000> : vector<256xf32>
    %13 = vector.multi_reduction <maximumf>, %12, %cst_11 [1] : vector<256x128xf32> to vector<256xf32>
    %14 = vector.shape_cast %13 : vector<256xf32> to vector<256x1xf32>
    %15 = vector.broadcast %14 : vector<256x1xf32> to vector<256x128xf32>
    %16 = arith.subf %12, %15 : vector<256x128xf32>
    %17 = math.exp %16 : vector<256x128xf32>
    %cst_12 = arith.constant dense<0.000000e+00> : vector<256xf32>
    %18 = vector.multi_reduction <add>, %17, %cst_12 [1] : vector<256x128xf32> to vector<256xf32>
    %19 = vector.shape_cast %18 : vector<256xf32> to vector<256x1xf32>
    %20 = vector.extract_strided_slice %17 {offsets = [0, 0], sizes = [256, 2], strides = [1, 1]} : vector<256x128xf32> to vector<256x2xf32>
    %21 = vector.broadcast %19 : vector<256x1xf32> to vector<256x2xf32>
    %22 = arith.divf %20, %21 : vector<256x2xf32>
    %c0_13 = arith.constant 0 : index
    %c0_14 = arith.constant 0 : index
    %23 = vector.load %arg6[%c0_13, %c0_14] : memref<256x2xf32, #tpu.memory_space<vmem>>, vector<256x2xf32>
    tpu.vector_store %arg6[%c0_13, %c0_14], %22 {strides = array<i32>} : memref<256x2xf32, #tpu.memory_space<vmem>>, vector<256x2xf32>,
    return
  }
  func.func @transform_0(%arg0: i32) -> (i32, i32) {
    %c0_i32 = arith.constant 0 : i32
    %c0_i32_0 = arith.constant 0 : i32
    return %arg0, %c0_i32 : i32, i32
  }
  func.func @transform_1(%arg0: i32) -> (i32, i32) {
    %c0_i32 = arith.constant 0 : i32
    %c0_i32_0 = arith.constant 0 : i32
    %c0_i32_1 = arith.constant 0 : i32
    return %c0_i32, %c0_i32_0 : i32, i32
  }
  func.func @transform_2(%arg0: i32) -> (i32, i32) {
    %c0_i32 = arith.constant 0 : i32
    %c0_i32_0 = arith.constant 0 : i32
    %c0_i32_1 = arith.constant 0 : i32
    return %c0_i32, %c0_i32_0 : i32, i32
  }
  func.func @transform_3(%arg0: i32) -> (i32, i32) {
    %c0_i32 = arith.constant 0 : i32
    %c0_i32_0 = arith.constant 0 : i32
    %c0_i32_1 = arith.constant 0 : i32
    return %c0_i32, %c0_i32_0 : i32, i32
  }
  func.func @transform_4(%arg0: i32) -> (i32, i32) {
    %c0_i32 = arith.constant 0 : i32
    %c0_i32_0 = arith.constant 0 : i32
    %c0_i32_1 = arith.constant 0 : i32
    return %c0_i32, %c0_i32_0 : i32, i32
  }
  func.func @transform_5(%arg0: i32) -> (i32, i32) {
    %c0_i32 = arith.constant 0 : i32
    %c0_i32_0 = arith.constant 0 : i32
    return %arg0, %c0_i32 : i32, i32
  }
}

</mosaic_0001>

<llo_original>
// kernel: _policy_net_forward.1
$region0: #{_policy_net_forward.1}
  #allocation0 [shape = 'u32[]', space=smem, size = 0x4, offset = 0x4, fixed_abs, tag = 'smem constant byte address 0x4 - core index']
  #allocation1 [shape = 'u32[144,128]{1,0:T(1,128)}', space=vmem, size = 0x12000, scoped, tag = 'internal scratch']
  %s0 = inlined_call_operand.vmem [shape: f32[256,4], index: 0, kind: input, shape index: {}]
  %s1 = inlined_call_operand.vmem [shape: f32[4,128], index: 1, kind: input, shape index: {}]
  %s2 = inlined_call_operand.vmem [shape: f32[1,128], index: 2, kind: input, shape index: {}]
  %s3 = inlined_call_operand.vmem [shape: f32[128,128], index: 3, kind: input, shape index: {}]
  %s4 = inlined_call_operand.vmem [shape: f32[1,128], index: 4, kind: input, shape index: {}]
  %s5 = inlined_call_operand.vmem [shape: f32[256,2], index: 5, kind: output, shape index: {}]
  %s6 = sld [smem:[#allocation0]]
  $region30: #{_policy_net_forward.1} parent=0
    _
  %s8 = ssub.s32 1, %s6
  %s9 = scalar_select 0, %s8, %s6
  // Predicated region
  $region2: #{_policy_net_forward.1} parent=0 // pred_check
    _
  $region3: #{_policy_net_forward.1} parent=0 // pred_check_branch
    %11 = sbr.rel (0) target = $region5
  $region4: #{_policy_net_forward.1} parent=0 // pred_region
    _
  $region5: #{_policy_net_forward.1} parent=0 // pred_fallthru
    _
  // Predicated region
  $region6: #{_policy_net_forward.1} parent=0 // pred_check
    _
  $region7: #{_policy_net_forward.1} parent=0 // pred_check_branch
    %13 = sbr.rel (0) target = $region9
  $region8: #{_policy_net_forward.1} parent=0 // pred_region
    _
  $region9: #{_policy_net_forward.1} parent=0 // pred_fallthru
    _
  // Predicated region
  $region10: #{_policy_net_forward.1} parent=0 // pred_check
    _
  $region11: #{_policy_net_forward.1} parent=0 // pred_check_branch
    %15 = sbr.rel (0) target = $region13
  $region12: #{_policy_net_forward.1} parent=0 // pred_region
    _
  $region13: #{_policy_net_forward.1} parent=0 // pred_fallthru
    _
  // Predicated region
  $region14: #{_policy_net_forward.1} parent=0 // pred_check
    _
  $region15: #{_policy_net_forward.1} parent=0 // pred_check_branch
    %17 = sbr.rel (0) target = $region17
  $region16: #{_policy_net_forward.1} parent=0 // pred_region
    _
  $region17: #{_policy_net_forward.1} parent=0 // pred_fallthru
    _
  // Predicated region
  $region18: #{_policy_net_forward.1} parent=0 // pred_check
    _
  $region19: #{_policy_net_forward.1} parent=0 // pred_check_branch
    %19 = sbr.rel (0) target = $region21
  $region20: #{_policy_net_forward.1} parent=0 // pred_region
    _
  $region21: #{_policy_net_forward.1} parent=0 // pred_fallthru
    _
  %v20 = vld [vmem:[%s0] sm:$0xff]
  %v21 = vld [vmem:[%s0 + $0x8] sm:$0xff]
  %v22 = vld [vmem:[%s0 + $0x10] sm:$0xff]
  %v23 = vld [vmem:[%s0 + $0x18] sm:$0xff]
  %v24 = vld [vmem:[%s0 + $0x20] sm:$0xff]
  %v25 = vld [vmem:[%s0 + $0x28] sm:$0xff]
  %v26 = vld [vmem:[%s0 + $0x30] sm:$0xff]
  %v27 = vld [vmem:[%s0 + $0x38] sm:$0xff]
  %v28 = vld [vmem:[%s0 + $0x40] sm:$0xff]
  %v29 = vld [vmem:[%s0 + $0x48] sm:$0xff]
  %v30 = vld [vmem:[%s0 + $0x50] sm:$0xff]
  %v31 = vld [vmem:[%s0 + $0x58] sm:$0xff]
  %v32 = vld [vmem:[%s0 + $0x60] sm:$0xff]
  %v33 = vld [vmem:[%s0 + $0x68] sm:$0xff]
  %v34 = vld [vmem:[%s0 + $0x70] sm:$0xff]
  %v35 = vld [vmem:[%s0 + $0x78] sm:$0xff]
  %v36 = vld [vmem:[%s0 + $0x80] sm:$0xff]
  %v37 = vld [vmem:[%s0 + $0x88] sm:$0xff]
  %v38 = vld [vmem:[%s0 + $0x90] sm:$0xff]
  %v39 = vld [vmem:[%s0 + $0x98] sm:$0xff]
  %v40 = vld [vmem:[%s0 + $0xa0] sm:$0xff]
  %v41 = vld [vmem:[%s0 + $0xa8] sm:$0xff]
  %v42 = vld [vmem:[%s0 + $0xb0] sm:$0xff]
  %v43 = vld [vmem:[%s0 + $0xb8] sm:$0xff]
  %v44 = vld [vmem:[%s0 + $0xc0] sm:$0xff]
  %v45 = vld [vmem:[%s0 + $0xc8] sm:$0xff]
  %v46 = vld [vmem:[%s0 + $0xd0] sm:$0xff]
  %v47 = vld [vmem:[%s0 + $0xd8] sm:$0xff]
  %v48 = vld [vmem:[%s0 + $0xe0] sm:$0xff]
  %v49 = vld [vmem:[%s0 + $0xe8] sm:$0xff]
  %v50 = vld [vmem:[%s0 + $0xf0] sm:$0xff]
  %v51 = vld [vmem:[%s0 + $0xf8] sm:$0xff]
  %v52 = vld [vmem:[%s1] sm:$0xf]
  %v53 = vld [vmem:[%s2] sm:$0x1]
  %v55 = vlaneseq
  %v56 = vshrl.u32 %v55, 7
  %v57 = vsub.s32 0, %v56
  %v58 = vrot.slane %v53, %v57
  %vm60 = vcmask 31744
  %v62 = vsel %vm60, %v20, 0
  %v65 = vsel %vm60, %v21, 0
  %v68 = vsel %vm60, %v22, 0
  %v71 = vsel %vm60, %v23, 0
  %v74 = vsel %vm60, %v24, 0
  %v77 = vsel %vm60, %v25, 0
  %v80 = vsel %vm60, %v26, 0
  %v83 = vsel %vm60, %v27, 0
  %v86 = vsel %vm60, %v28, 0
  %v89 = vsel %vm60, %v29, 0
  %v92 = vsel %vm60, %v30, 0
  %v95 = vsel %vm60, %v31, 0
  %v98 = vsel %vm60, %v32, 0
  %v101 = vsel %vm60, %v33, 0
  %v104 = vsel %vm60, %v34, 0
  %v107 = vsel %vm60, %v35, 0
  %v110 = vsel %vm60, %v36, 0
  %v113 = vsel %vm60, %v37, 0
  %v116 = vsel %vm60, %v38, 0
  %v119 = vsel %vm60, %v39, 0
  %v122 = vsel %vm60, %v40, 0
  %v125 = vsel %vm60, %v41, 0
  %v128 = vsel %vm60, %v42, 0
  %v131 = vsel %vm60, %v43, 0
  %v134 = vsel %vm60, %v44, 0
  %v137 = vsel %vm60, %v45, 0
  %v140 = vsel %vm60, %v46, 0
  %v143 = vsel %vm60, %v47, 0
  %v146 = vsel %vm60, %v48, 0
  %v149 = vsel %vm60, %v49, 0
  %v152 = vsel %vm60, %v50, 0
  %v155 = vsel %vm60, %v51, 0
  %vm157 = vcmask 1043456
  %v159 = vsel %vm157, %v52, 0
  %161 = vmatprep.subr.mxu0 0.0
  %162 = vmatpush1.msra.mxu0 %v159
  %163 = vmatprep.subr.mxu0 0.0
  %164 = vmatpush1.msra.mxu0 0.0
  %165 = vmatprep.subr.mxu0 0.0
  %166 = vmatpush1.msra.mxu0 0.0
  %167 = vmatprep.subr.mxu0 0.0
  %168 = vmatpush1.msra.mxu0 0.0
  %169 = vmatprep.subr.mxu0 0.0
  %170 = vmatpush1.msra.mxu0 0.0
  %171 = vmatprep.subr.mxu0 0.0
  %172 = vmatpush1.msra.mxu0 0.0
  %173 = vmatprep.subr.mxu0 0.0
  %174 = vmatpush1.msra.mxu0 0.0
  %175 = vmatprep.subr.mxu0 0.0
  %176 = vmatpush1.msra.mxu0 0.0
  %177 = vmatprep.subr.mxu0 0.0
  %178 = vmatpush1.msra.mxu0 0.0
  %179 = vmatprep.subr.mxu0 0.0
  %180 = vmatpush1.msra.mxu0 0.0
  %181 = vmatprep.subr.mxu0 0.0
  %182 = vmatpush1.msra.mxu0 0.0
  %183 = vmatprep.subr.mxu0 0.0
  %184 = vmatpush1.msra.mxu0 0.0
  %185 = vmatprep.subr.mxu0 0.0
  %186 = vmatpush1.msra.mxu0 0.0
  %187 = vmatprep.subr.mxu0 0.0
  %188 = vmatpush1.msra.mxu0 0.0
  %189 = vmatprep.subr.mxu0 0.0
  %190 = vmatpush1.msra.mxu0 0.0
  %191 = vmatprep.subr.mxu0 0.0
  %192 = vmatpush1.msra.mxu0 0.0
  %193 = vmatprep.subr.mxu0 0.0
  %194 = vmatpush1.msra.mxu0 0.0
  %195 = vmatprep.subr.mxu0 0.0
  %196 = vmatpush1.msra.mxu0 0.0
  %197 = vmatprep.subr.mxu0 0.0
  %198 = vmatpush1.msra.mxu0 0.0
  %199 = vmatprep.subr.mxu0 0.0
  %200 = vmatpush1.msra.mxu0 0.0
  %201 = vmatprep.subr.mxu0 0.0
  %202 = vmatpush1.msra.mxu0 0.0
  %203 = vmatprep.subr.mxu0 0.0
  %204 = vmatpush1.msra.mxu0 0.0
  %205 = vmatprep.subr.mxu0 0.0
  %206 = vmatpush1.msra.mxu0 0.0
  %207 = vmatprep.subr.mxu0 0.0
  %208 = vmatpush1.msra.mxu0 0.0
  %209 = vmatprep.subr.mxu0 0.0
  %210 = vmatpush1.msra.mxu0 0.0
  %211 = vmatprep.subr.mxu0 0.0
  %212 = vmatpush1.msra.mxu0 0.0
  %213 = vmatprep.subr.mxu0 0.0
  %214 = vmatpush1.msra.mxu0 0.0
  %215 = vmatprep.subr.mxu0 0.0
  %216 = vmatpush1.msra.mxu0 0.0
  %217 = vmatprep.subr.mxu0 0.0
  %218 = vmatpush1.msra.mxu0 0.0
  %219 = vmatprep.subr.mxu0 0.0
  %220 = vmatpush1.msra.mxu0 0.0
  %221 = vmatprep.subr.mxu0 0.0
  %222 = vmatpush1.msra.mxu0 0.0
  %223 = vmatprep.subr.mxu0 0.0
  %224 = vmatpush1.msra.mxu0 0.0
  %225 = vmatprep.mubr.f32.mxu0 0.0
  %226 = vmatmul.mubr.f32.gmra.mrb[0].mxu0 %v62
  %v227 = vpop.f32.mrb[0].mxu0
  %v228 = vadd.f32 %v58, %v227
  %v229 = vpop.f32.mrb[0].mxu0
  %230 = vmatprep.mubr.f32.mxu0 0.0
  %231 = vmatmul.mubr.f32.gmra.mrb[0].mxu0 %v65
  %v232 = vpop.f32.mrb[0].mxu0
  %v233 = vadd.f32 %v58, %v232
  %v234 = vpop.f32.mrb[0].mxu0
  %235 = vmatprep.mubr.f32.mxu0 0.0
  %236 = vmatmul.mubr.f32.gmra.mrb[0].mxu0 %v68
  %v237 = vpop.f32.mrb[0].mxu0
  %v238 = vadd.f32 %v58, %v237
  %v239 = vpop.f32.mrb[0].mxu0
  %240 = vmatprep.mubr.f32.mxu0 0.0
  %241 = vmatmul.mubr.f32.gmra.mrb[0].mxu0 %v71
  %v242 = vpop.f32.mrb[0].mxu0
  %v243 = vadd.f32 %v58, %v242
  %v244 = vpop.f32.mrb[0].mxu0
  %245 = vmatprep.mubr.f32.mxu0 0.0
  %246 = vmatmul.mubr.f32.gmra.mrb[0].mxu0 %v74
  %v247 = vpop.f32.mrb[0].mxu0
  %v248 = vadd.f32 %v58, %v247
  %v249 = vpop.f32.mrb[0].mxu0
  %250 = vmatprep.mubr.f32.mxu0 0.0
  %251 = vmatmul.mubr.f32.gmra.mrb[0].mxu0 %v77
  %v252 = vpop.f32.mrb[0].mxu0
  %v253 = vadd.f32 %v58, %v252
  %v254 = vpop.f32.mrb[0].mxu0
  %255 = vmatprep.mubr.f32.mxu0 0.0
  %256 = vmatmul.mubr.f32.gmra.mrb[0].mxu0 %v80
  %v257 = vpop.f32.mrb[0].mxu0
  %v258 = vadd.f32 %v58, %v257
  %v259 = vpop.f32.mrb[0].mxu0
  %260 = vmatprep.mubr.f32.mxu0 0.0
  %261 = vmatmul.mubr.f32.gmra.mrb[0].mxu0 %v83
  %v262 = vpop.f32.mrb[0].mxu0
  %v263 = vadd.f32 %v58, %v262
  %v264 = vpop.f32.mrb[0].mxu0
  %265 = vmatprep.mubr.f32.mxu0 0.0
  %266 = vmatmul.mubr.f32.gmra.mrb[0].mxu0 %v86
  %v267 = vpop.f32.mrb[0].mxu0
  %v268 = vadd.f32 %v58, %v267
  %v269 = vpop.f32.mrb[0].mxu0
  %270 = vmatprep.mubr.f32.mxu0 0.0
  %271 = vmatmul.mubr.f32.gmra.mrb[0].mxu0 %v89
  %v272 = vpop.f32.mrb[0].mxu0
  %v273 = vadd.f32 %v58, %v272
  %v274 = vpop.f32.mrb[0].mxu0
  %275 = vmatprep.mubr.f32.mxu0 0.0
  %276 = vmatmul.mubr.f32.gmra.mrb[0].mxu0 %v92
  %v277 = vpop.f32.mrb[0].mxu0
  %v278 = vadd.f32 %v58, %v277
  %v279 = vpop.f32.mrb[0].mxu0
  %280 = vmatprep.mubr.f32.mxu0 0.0
  %281 = vmatmul.mubr.f32.gmra.mrb[0].mxu0 %v95
  %v282 = vpop.f32.mrb[0].mxu0
  %v283 = vadd.f32 %v58, %v282
  %v284 = vpop.f32.mrb[0].mxu0
  %285 = vmatprep.mubr.f32.mxu0 0.0
  %286 = vmatmul.mubr.f32.gmra.mrb[0].mxu0 %v98
  %v287 = vpop.f32.mrb[0].mxu0
  %v288 = vadd.f32 %v58, %v287
  %v289 = vpop.f32.mrb[0].mxu0
  %290 = vmatprep.mubr.f32.mxu0 0.0
  %291 = vmatmul.mubr.f32.gmra.mrb[0].mxu0 %v101
  %v292 = vpop.f32.mrb[0].mxu0
  %v293 = vadd.f32 %v58, %v292
  %v294 = vpop.f32.mrb[0].mxu0
  %295 = vmatprep.mubr.f32.mxu0 0.0
  %296 = vmatmul.mubr.f32.gmra.mrb[0].mxu0 %v104
  %v297 = vpop.f32.mrb[0].mxu0
  %v298 = vadd.f32 %v58, %v297
  %v299 = vpop.f32.mrb[0].mxu0
  %300 = vmatprep.mubr.f32.mxu0 0.0
  %301 = vmatmul.mubr.f32.gmra.mrb[0].mxu0 %v107
  %v302 = vpop.f32.mrb[0].mxu0
  %v303 = vadd.f32 %v58, %v302
  %v304 = vpop.f32.mrb[0].mxu0
  %305 = vmatprep.mubr.f32.mxu0 0.0
  %306 = vmatmul.mubr.f32.gmra.mrb[0].mxu0 %v110
  %v307 = vpop.f32.mrb[0].mxu0
  %v308 = vadd.f32 %v58, %v307
  %v309 = vpop.f32.mrb[0].mxu0
  %310 = vmatprep.mubr.f32.mxu0 0.0
  %311 = vmatmul.mubr.f32.gmra.mrb[0].mxu0 %v113
  %v312 = vpop.f32.mrb[0].mxu0
  %v313 = vadd.f32 %v58, %v312
  %v314 = vpop.f32.mrb[0].mxu0
  %315 = vmatprep.mubr.f32.mxu0 0.0
  %316 = vmatmul.mubr.f32.gmra.mrb[0].mxu0 %v116
  %v317 = vpop.f32.mrb[0].mxu0
  %v318 = vadd.f32 %v58, %v317
  %v319 = vpop.f32.mrb[0].mxu0
  %320 = vmatprep.mubr.f32.mxu0 0.0
  %321 = vmatmul.mubr.f32.gmra.mrb[0].mxu0 %v119
  %v322 = vpop.f32.mrb[0].mxu0
  %v323 = vadd.f32 %v58, %v322
  %v324 = vpop.f32.mrb[0].mxu0
  %325 = vmatprep.mubr.f32.mxu0 0.0
  %326 = vmatmul.mubr.f32.gmra.mrb[0].mxu0 %v122
  %v327 = vpop.f32.mrb[0].mxu0
  %v328 = vadd.f32 %v58, %v327
  %v329 = vpop.f32.mrb[0].mxu0
  %330 = vmatprep.mubr.f32.mxu0 0.0
  %331 = vmatmul.mubr.f32.gmra.mrb[0].mxu0 %v125
  %v332 = vpop.f32.mrb[0].mxu0
  %v333 = vadd.f32 %v58, %v332
  %v334 = vpop.f32.mrb[0].mxu0
  %335 = vmatprep.mubr.f32.mxu0 0.0
  %336 = vmatmul.mubr.f32.gmra.mrb[0].mxu0 %v128
  %v337 = vpop.f32.mrb[0].mxu0
  %v338 = vadd.f32 %v58, %v337
  %v339 = vpop.f32.mrb[0].mxu0
  %340 = vmatprep.mubr.f32.mxu0 0.0
  %341 = vmatmul.mubr.f32.gmra.mrb[0].mxu0 %v131
  %v342 = vpop.f32.mrb[0].mxu0
  %v343 = vadd.f32 %v58, %v342
  %v344 = vpop.f32.mrb[0].mxu0
  %345 = vmatprep.mubr.f32.mxu0 0.0
  %346 = vmatmul.mubr.f32.gmra.mrb[0].mxu0 %v134
  %v347 = vpop.f32.mrb[0].mxu0
  %v348 = vadd.f32 %v58, %v347
  %v349 = vpop.f32.mrb[0].mxu0
  %350 = vmatprep.mubr.f32.mxu0 0.0
  %351 = vmatmul.mubr.f32.gmra.mrb[0].mxu0 %v137
  %v352 = vpop.f32.mrb[0].mxu0
  %v353 = vadd.f32 %v58, %v352
  %v354 = vpop.f32.mrb[0].mxu0
  %355 = vmatprep.mubr.f32.mxu0 0.0
  %356 = vmatmul.mubr.f32.gmra.mrb[0].mxu0 %v140
  %v357 = vpop.f32.mrb[0].mxu0
  %v358 = vadd.f32 %v58, %v357
  %v359 = vpop.f32.mrb[0].mxu0
  %360 = vmatprep.mubr.f32.mxu0 0.0
  %361 = vmatmul.mubr.f32.gmra.mrb[0].mxu0 %v143
  %v362 = vpop.f32.mrb[0].mxu0
  %v363 = vadd.f32 %v58, %v362
  %v364 = vpop.f32.mrb[0].mxu0
  %365 = vmatprep.mubr.f32.mxu0 0.0
  %366 = vmatmul.mubr.f32.gmra.mrb[0].mxu0 %v146
  %v367 = vpop.f32.mrb[0].mxu0
  %v368 = vadd.f32 %v58, %v367
  %v369 = vpop.f32.mrb[0].mxu0
  %370 = vmatprep.mubr.f32.mxu0 0.0
  %371 = vmatmul.mubr.f32.gmra.mrb[0].mxu0 %v149
  %v372 = vpop.f32.mrb[0].mxu0
  %v373 = vadd.f32 %v58, %v372
  %v374 = vpop.f32.mrb[0].mxu0
  %375 = vmatprep.mubr.f32.mxu0 0.0
  %376 = vmatmul.mubr.f32.gmra.mrb[0].mxu0 %v152
  %v377 = vpop.f32.mrb[0].mxu0
  %v378 = vadd.f32 %v58, %v377
  %v379 = vpop.f32.mrb[0].mxu0
  %380 = vmatprep.mubr.f32.mxu0 0.0
  %381 = vmatmul.mubr.f32.gmra.mrb[0].mxu0 %v155
  %v382 = vpop.f32.mrb[0].mxu0
  %v383 = vadd.f32 %v58, %v382
  %v384 = vpop.f32.mrb[0].mxu0
  %385 = vdwg.mxu0
  %v386 = vmax.f32 %v228, 0.0
  %v387 = vmax.f32 %v233, 0.0
  %v388 = vmax.f32 %v238, 0.0
  %v389 = vmax.f32 %v243, 0.0
  %v390 = vmax.f32 %v248, 0.0
  %v391 = vmax.f32 %v253, 0.0
  %v392 = vmax.f32 %v258, 0.0
  %v393 = vmax.f32 %v263, 0.0
  %v394 = vmax.f32 %v268, 0.0
  %v395 = vmax.f32 %v273, 0.0
  %v396 = vmax.f32 %v278, 0.0
  %v397 = vmax.f32 %v283, 0.0
  %v398 = vmax.f32 %v288, 0.0
  %v399 = vmax.f32 %v293, 0.0
  %v400 = vmax.f32 %v298, 0.0
  %v401 = vmax.f32 %v303, 0.0
  %v402 = vmax.f32 %v308, 0.0
  %v403 = vmax.f32 %v313, 0.0
  %v404 = vmax.f32 %v318, 0.0
  %v405 = vmax.f32 %v323, 0.0
  %v406 = vmax.f32 %v328, 0.0
  %v407 = vmax.f32 %v333, 0.0
  %v408 = vmax.f32 %v338, 0.0
  %v409 = vmax.f32 %v343, 0.0
  %v410 = vmax.f32 %v348, 0.0
  %v411 = vmax.f32 %v353, 0.0
  %v412 = vmax.f32 %v358, 0.0
  %v413 = vmax.f32 %v363, 0.0
  %v414 = vmax.f32 %v368, 0.0
  %v415 = vmax.f32 %v373, 0.0
  %v416 = vmax.f32 %v378, 0.0
  %v417 = vmax.f32 %v383, 0.0
  %v418 = vld [vmem:[%s3] sm:$0xff]
  %v419 = vld [vmem:[%s3 + $0x8] sm:$0xff]
  %v420 = vld [vmem:[%s3 + $0x10] sm:$0xff]
  %v421 = vld [vmem:[%s3 + $0x18] sm:$0xff]
  %v422 = vld [vmem:[%s3 + $0x20] sm:$0xff]
  %v423 = vld [vmem:[%s3 + $0x28] sm:$0xff]
  %v424 = vld [vmem:[%s3 + $0x30] sm:$0xff]
  %v425 = vld [vmem:[%s3 + $0x38] sm:$0xff]
  %v426 = vld [vmem:[%s3 + $0x40] sm:$0xff]
  %v427 = vld [vmem:[%s3 + $0x48] sm:$0xff]
  %v428 = vld [vmem:[%s3 + $0x50] sm:$0xff]
  %v429 = vld [vmem:[%s3 + $0x58] sm:$0xff]
  %v430 = vld [vmem:[%s3 + $0x60] sm:$0xff]
  %v431 = vld [vmem:[%s3 + $0x68] sm:$0xff]
  %v432 = vld [vmem:[%s3 + $0x70] sm:$0xff]
  %v433 = vld [vmem:[%s3 + $0x78] sm:$0xff]
  %v434 = vld [vmem:[%s4] sm:$0x1]
  %v436 = vlaneseq
  %v437 = vshrl.u32 %v436, 7
  %v438 = vsub.s32 0, %v437
  %v439 = vrot.slane %v434, %v438
  %441 = vmatprep.subr.mxu0 0.0
  %442 = vmatpush1.msra.mxu0 %v418
  %443 = vmatprep.subr.mxu0 0.0
  %444 = vmatpush1.msra.mxu0 %v419
  %445 = vmatprep.subr.mxu0 0.0
  %446 = vmatpush1.msra.mxu0 %v420
  %447 = vmatprep.subr.mxu0 0.0
  %448 = vmatpush1.msra.mxu0 %v421
  %449 = vmatprep.subr.mxu0 0.0
  %450 = vmatpush1.msra.mxu0 %v422
  %451 = vmatprep.subr.mxu0 0.0
  %452 = vmatpush1.msra.mxu0 %v423
  %453 = vmatprep.subr.mxu0 0.0
  %454 = vmatpush1.msra.mxu0 %v424
  %455 = vmatprep.subr.mxu0 0.0
  %456 = vmatpush1.msra.mxu0 %v425
  %457 = vmatprep.subr.mxu0 0.0
  %458 = vmatpush1.msra.mxu0 %v426
  %459 = vmatprep.subr.mxu0 0.0
  %460 = vmatpush1.msra.mxu0 %v427
  %461 = vmatprep.subr.mxu0 0.0
  %462 = vmatpush1.msra.mxu0 %v428
  %463 = vmatprep.subr.mxu0 0.0
  %464 = vmatpush1.msra.mxu0 %v429
  %465 = vmatprep.subr.mxu0 0.0
  %466 = vmatpush1.msra.mxu0 %v430
  %467 = vmatprep.subr.mxu0 0.0
  %468 = vmatpush1.msra.mxu0 %v431
  %469 = vmatprep.subr.mxu0 0.0
  %470 = vmatpush1.msra.mxu0 %v432
  %471 = vmatprep.subr.mxu0 0.0
  %472 = vmatpush1.msra.mxu0 %v433
  %473 = vmatprep.subr.mxu0 0.0
  %474 = vmatpush1.msra.mxu0 0.0
  %475 = vmatprep.subr.mxu0 0.0
  %476 = vmatpush1.msra.mxu0 0.0
  %477 = vmatprep.subr.mxu0 0.0
  %478 = vmatpush1.msra.mxu0 0.0
  %479 = vmatprep.subr.mxu0 0.0
  %480 = vmatpush1.msra.mxu0 0.0
  %481 = vmatprep.subr.mxu0 0.0
  %482 = vmatpush1.msra.mxu0 0.0
  %483 = vmatprep.subr.mxu0 0.0
  %484 = vmatpush1.msra.mxu0 0.0
  %485 = vmatprep.subr.mxu0 0.0
  %486 = vmatpush1.msra.mxu0 0.0
  %487 = vmatprep.subr.mxu0 0.0
  %488 = vmatpush1.msra.mxu0 0.0
  %489 = vmatprep.subr.mxu0 0.0
  %490 = vmatpush1.msra.mxu0 0.0
  %491 = vmatprep.subr.mxu0 0.0
  %492 = vmatpush1.msra.mxu0 0.0
  %493 = vmatprep.subr.mxu0 0.0
  %494 = vmatpush1.msra.mxu0 0.0
  %495 = vmatprep.subr.mxu0 0.0
  %496 = vmatpush1.msra.mxu0 0.0
  %497 = vmatprep.subr.mxu0 0.0
  %498 = vmatpush1.msra.mxu0 0.0
  %499 = vmatprep.subr.mxu0 0.0
  %500 = vmatpush1.msra.mxu0 0.0
  %501 = vmatprep.subr.mxu0 0.0
  %502 = vmatpush1.msra.mxu0 0.0
  %503 = vmatprep.subr.mxu0 0.0
  %504 = vmatpush1.msra.mxu0 0.0
  %505 = vmatprep.mubr.f32.mxu0 0.0
  %506 = vmatmul.mubr.f32.gmra.mrb[0].mxu0 %v386
  %v507 = vpop.f32.mrb[0].mxu0
  %v508 = vadd.f32 %v439, %v507
  %v509 = vpop.f32.mrb[0].mxu0
  %510 = vmatprep.mubr.f32.mxu0 0.0
  %511 = vmatmul.mubr.f32.gmra.mrb[0].mxu0 %v387
  %v512 = vpop.f32.mrb[0].mxu0
  %v513 = vadd.f32 %v439, %v512
  %v514 = vpop.f32.mrb[0].mxu0
  %515 = vmatprep.mubr.f32.mxu0 0.0
  %516 = vmatmul.mubr.f32.gmra.mrb[0].mxu0 %v388
  %v517 = vpop.f32.mrb[0].mxu0
  %v518 = vadd.f32 %v439, %v517
  %v519 = vpop.f32.mrb[0].mxu0
  %520 = vmatprep.mubr.f32.mxu0 0.0
  %521 = vmatmul.mubr.f32.gmra.mrb[0].mxu0 %v389
  %v522 = vpop.f32.mrb[0].mxu0
  %v523 = vadd.f32 %v439, %v522
  %v524 = vpop.f32.mrb[0].mxu0
  %525 = vmatprep.mubr.f32.mxu0 0.0
  %526 = vmatmul.mubr.f32.gmra.mrb[0].mxu0 %v390
  %v527 = vpop.f32.mrb[0].mxu0
  %v528 = vadd.f32 %v439, %v527
  %v529 = vpop.f32.mrb[0].mxu0
  %530 = vmatprep.mubr.f32.mxu0 0.0
  %531 = vmatmul.mubr.f32.gmra.mrb[0].mxu0 %v391
  %v532 = vpop.f32.mrb[0].mxu0
  %v533 = vadd.f32 %v439, %v532
  %v534 = vpop.f32.mrb[0].mxu0
  %535 = vmatprep.mubr.f32.mxu0 0.0
  %536 = vmatmul.mubr.f32.gmra.mrb[0].mxu0 %v392
  %v537 = vpop.f32.mrb[0].mxu0
  %v538 = vadd.f32 %v439, %v537
  %v539 = vpop.f32.mrb[0].mxu0
  %540 = vmatprep.mubr.f32.mxu0 0.0
  %541 = vmatmul.mubr.f32.gmra.mrb[0].mxu0 %v393
  %v542 = vpop.f32.mrb[0].mxu0
  %v543 = vadd.f32 %v439, %v542
  %v544 = vpop.f32.mrb[0].mxu0
  %545 = vmatprep.mubr.f32.mxu0 0.0
  %546 = vmatmul.mubr.f32.gmra.mrb[0].mxu0 %v394
  %v547 = vpop.f32.mrb[0].mxu0
  %v548 = vadd.f32 %v439, %v547
  %v549 = vpop.f32.mrb[0].mxu0
  %550 = vmatprep.mubr.f32.mxu0 0.0
  %551 = vmatmul.mubr.f32.gmra.mrb[0].mxu0 %v395
  %v552 = vpop.f32.mrb[0].mxu0
  %v553 = vadd.f32 %v439, %v552
  %v554 = vpop.f32.mrb[0].mxu0
  %555 = vmatprep.mubr.f32.mxu0 0.0
  %556 = vmatmul.mubr.f32.gmra.mrb[0].mxu0 %v396
  %v557 = vpop.f32.mrb[0].mxu0
  %v558 = vadd.f32 %v439, %v557
  %v559 = vpop.f32.mrb[0].mxu0
  %560 = vmatprep.mubr.f32.mxu0 0.0
  %561 = vmatmul.mubr.f32.gmra.mrb[0].mxu0 %v397
  %v562 = vpop.f32.mrb[0].mxu0
  %v563 = vadd.f32 %v439, %v562
  %v564 = vpop.f32.mrb[0].mxu0
  %565 = vmatprep.mubr.f32.mxu0 0.0
  %566 = vmatmul.mubr.f32.gmra.mrb[0].mxu0 %v398
  %v567 = vpop.f32.mrb[0].mxu0
  %v568 = vadd.f32 %v439, %v567
  %v569 = vpop.f32.mrb[0].mxu0
  %570 = vmatprep.mubr.f32.mxu0 0.0
  %571 = vmatmul.mubr.f32.gmra.mrb[0].mxu0 %v399
  %v572 = vpop.f32.mrb[0].mxu0
  %v573 = vadd.f32 %v439, %v572
  %v574 = vpop.f32.mrb[0].mxu0
  %575 = vmatprep.mubr.f32.mxu0 0.0
  %576 = vmatmul.mubr.f32.gmra.mrb[0].mxu0 %v400
  %v577 = vpop.f32.mrb[0].mxu0
  %v578 = vadd.f32 %v439, %v577
  %v579 = vpop.f32.mrb[0].mxu0
  %580 = vmatprep.mubr.f32.mxu0 0.0
  %581 = vmatmul.mubr.f32.gmra.mrb[0].mxu0 %v401
  %v582 = vpop.f32.mrb[0].mxu0
  %v583 = vadd.f32 %v439, %v582
  %v584 = vpop.f32.mrb[0].mxu0
  %585 = vmatprep.mubr.f32.mxu0 0.0
  %586 = vmatmul.mubr.f32.gmra.mrb[0].mxu0 %v402
  %v587 = vpop.f32.mrb[0].mxu0
  %v588 = vadd.f32 %v439, %v587
  %v589 = vpop.f32.mrb[0].mxu0
  %590 = vmatprep.mubr.f32.mxu0 0.0
  %591 = vmatmul.mubr.f32.gmra.mrb[0].mxu0 %v403
  %v592 = vpop.f32.mrb[0].mxu0
  %v593 = vadd.f32 %v439, %v592
  %v594 = vpop.f32.mrb[0].mxu0
  %595 = vmatprep.mubr.f32.mxu0 0.0
  %596 = vmatmul.mubr.f32.gmra.mrb[0].mxu0 %v404
  %v597 = vpop.f32.mrb[0].mxu0
  %v598 = vadd.f32 %v439, %v597
  %v599 = vpop.f32.mrb[0].mxu0
  %600 = vmatprep.mubr.f32.mxu0 0.0
  %601 = vmatmul.mubr.f32.gmra.mrb[0].mxu0 %v405
  %v602 = vpop.f32.mrb[0].mxu0
  %v603 = vadd.f32 %v439, %v602
  %v604 = vpop.f32.mrb[0].mxu0
  %605 = vmatprep.mubr.f32.mxu0 0.0
  %606 = vmatmul.mubr.f32.gmra.mrb[0].mxu0 %v406
  %v607 = vpop.f32.mrb[0].mxu0
  %v608 = vadd.f32 %v439, %v607
  %v609 = vpop.f32.mrb[0].mxu0
  %610 = vmatprep.mubr.f32.mxu0 0.0
  %611 = vmatmul.mubr.f32.gmra.mrb[0].mxu0 %v407
  %v612 = vpop.f32.mrb[0].mxu0
  %v613 = vadd.f32 %v439, %v612
  %v614 = vpop.f32.mrb[0].mxu0
  %615 = vmatprep.mubr.f32.mxu0 0.0
  %616 = vmatmul.mubr.f32.gmra.mrb[0].mxu0 %v408
  %v617 = vpop.f32.mrb[0].mxu0
  %v618 = vadd.f32 %v439, %v617
  %v619 = vpop.f32.mrb[0].mxu0
  %620 = vmatprep.mubr.f32.mxu0 0.0
  %621 = vmatmul.mubr.f32.gmra.mrb[0].mxu0 %v409
  %v622 = vpop.f32.mrb[0].mxu0
  %v623 = vadd.f32 %v439, %v622
  %v624 = vpop.f32.mrb[0].mxu0
  %625 = vmatprep.mubr.f32.mxu0 0.0
  %626 = vmatmul.mubr.f32.gmra.mrb[0].mxu0 %v410
  %v627 = vpop.f32.mrb[0].mxu0
  %v628 = vadd.f32 %v439, %v627
  %v629 = vpop.f32.mrb[0].mxu0
  %630 = vmatprep.mubr.f32.mxu0 0.0
  %631 = vmatmul.mubr.f32.gmra.mrb[0].mxu0 %v411
  %v632 = vpop.f32.mrb[0].mxu0
  %v633 = vadd.f32 %v439, %v632
  %v634 = vpop.f32.mrb[0].mxu0
  %635 = vmatprep.mubr.f32.mxu0 0.0
  %636 = vmatmul.mubr.f32.gmra.mrb[0].mxu0 %v412
  %v637 = vpop.f32.mrb[0].mxu0
  %v638 = vadd.f32 %v439, %v637
  %v639 = vpop.f32.mrb[0].mxu0
  %640 = vmatprep.mubr.f32.mxu0 0.0
  %641 = vmatmul.mubr.f32.gmra.mrb[0].mxu0 %v413
  %v642 = vpop.f32.mrb[0].mxu0
  %v643 = vadd.f32 %v439, %v642
  %v644 = vpop.f32.mrb[0].mxu0
  %645 = vmatprep.mubr.f32.mxu0 0.0
  %646 = vmatmul.mubr.f32.gmra.mrb[0].mxu0 %v414
  %v647 = vpop.f32.mrb[0].mxu0
  %v648 = vadd.f32 %v439, %v647
  %v649 = vpop.f32.mrb[0].mxu0
  %650 = vmatprep.mubr.f32.mxu0 0.0
  %651 = vmatmul.mubr.f32.gmra.mrb[0].mxu0 %v415
  %v652 = vpop.f32.mrb[0].mxu0
  %v653 = vadd.f32 %v439, %v652
  %v654 = vpop.f32.mrb[0].mxu0
  %655 = vmatprep.mubr.f32.mxu0 0.0
  %656 = vmatmul.mubr.f32.gmra.mrb[0].mxu0 %v416
  %v657 = vpop.f32.mrb[0].mxu0
  %v658 = vadd.f32 %v439, %v657
  %v659 = vpop.f32.mrb[0].mxu0
  %660 = vmatprep.mubr.f32.mxu0 0.0
  %661 = vmatmul.mubr.f32.gmra.mrb[0].mxu0 %v417
  %v662 = vpop.f32.mrb[0].mxu0
  %v663 = vadd.f32 %v439, %v662
  %v664 = vpop.f32.mrb[0].mxu0
  %665 = vdwg.mxu0
  %666 = vmax.xlane.f32.xlu0 %v508
  %v667 = vpop.xlane.xlu0 %666
  %668 = vmax.xlane.f32.xlu0 %v513
  %v669 = vpop.xlane.xlu0 %668
  %670 = vmax.xlane.f32.xlu0 %v518
  %v671 = vpop.xlane.xlu0 %670
  %672 = vmax.xlane.f32.xlu0 %v523
  %v673 = vpop.xlane.xlu0 %672
  %674 = vmax.xlane.f32.xlu0 %v528
  %v675 = vpop.xlane.xlu0 %674
  %676 = vmax.xlane.f32.xlu0 %v533
  %v677 = vpop.xlane.xlu0 %676
  %678 = vmax.xlane.f32.xlu0 %v538
  %v679 = vpop.xlane.xlu0 %678
  %680 = vmax.xlane.f32.xlu0 %v543
  %v681 = vpop.xlane.xlu0 %680
  %682 = vmax.xlane.f32.xlu0 %v548
  %v683 = vpop.xlane.xlu0 %682
  %684 = vmax.xlane.f32.xlu0 %v553
  %v685 = vpop.xlane.xlu0 %684
  %686 = vmax.xlane.f32.xlu0 %v558
  %v687 = vpop.xlane.xlu0 %686
  %688 = vmax.xlane.f32.xlu0 %v563
  %v689 = vpop.xlane.xlu0 %688
  %690 = vmax.xlane.f32.xlu0 %v568
  %v691 = vpop.xlane.xlu0 %690
  %692 = vmax.xlane.f32.xlu0 %v573
  %v693 = vpop.xlane.xlu0 %692
  %694 = vmax.xlane.f32.xlu0 %v578
  %v695 = vpop.xlane.xlu0 %694
  %696 = vmax.xlane.f32.xlu0 %v583
  %v697 = vpop.xlane.xlu0 %696
  %698 = vmax.xlane.f32.xlu0 %v588
  %v699 = vpop.xlane.xlu0 %698
  %700 = vmax.xlane.f32.xlu0 %v593
  %v701 = vpop.xlane.xlu0 %700
  %702 = vmax.xlane.f32.xlu0 %v598
  %v703 = vpop.xlane.xlu0 %702
  %704 = vmax.xlane.f32.xlu0 %v603
  %v705 = vpop.xlane.xlu0 %704
  %706 = vmax.xlane.f32.xlu0 %v608
  %v707 = vpop.xlane.xlu0 %706
  %708 = vmax.xlane.f32.xlu0 %v613
  %v709 = vpop.xlane.xlu0 %708
  %710 = vmax.xlane.f32.xlu0 %v618
  %v711 = vpop.xlane.xlu0 %710
  %712 = vmax.xlane.f32.xlu0 %v623
  %v713 = vpop.xlane.xlu0 %712
  %714 = vmax.xlane.f32.xlu0 %v628
  %v715 = vpop.xlane.xlu0 %714
  %716 = vmax.xlane.f32.xlu0 %v633
  %v717 = vpop.xlane.xlu0 %716
  %718 = vmax.xlane.f32.xlu0 %v638
  %v719 = vpop.xlane.xlu0 %718
  %720 = vmax.xlane.f32.xlu0 %v643
  %v721 = vpop.xlane.xlu0 %720
  %722 = vmax.xlane.f32.xlu0 %v648
  %v723 = vpop.xlane.xlu0 %722
  %724 = vmax.xlane.f32.xlu0 %v653
  %v725 = vpop.xlane.xlu0 %724
  %726 = vmax.xlane.f32.xlu0 %v658
  %v727 = vpop.xlane.xlu0 %726
  %728 = vmax.xlane.f32.xlu0 %v663
  %v729 = vpop.xlane.xlu0 %728
  %v730 = vsub.f32 %v508, %v667
  %v731 = vsub.f32 %v513, %v669
  %v732 = vsub.f32 %v518, %v671
  %v733 = vsub.f32 %v523, %v673
  %v734 = vsub.f32 %v528, %v675
  %v735 = vsub.f32 %v533, %v677
  %v736 = vsub.f32 %v538, %v679
  %v737 = vsub.f32 %v543, %v681
  %v738 = vsub.f32 %v548, %v683
  %v739 = vsub.f32 %v553, %v685
  %v740 = vsub.f32 %v558, %v687
  %v741 = vsub.f32 %v563, %v689
  %v742 = vsub.f32 %v568, %v691
  %v743 = vsub.f32 %v573, %v693
  %v744 = vsub.f32 %v578, %v695
  %v745 = vsub.f32 %v583, %v697
  %v746 = vsub.f32 %v588, %v699
  %v747 = vsub.f32 %v593, %v701
  %v748 = vsub.f32 %v598, %v703
  %v749 = vsub.f32 %v603, %v705
  %v750 = vsub.f32 %v608, %v707
  %v751 = vsub.f32 %v613, %v709
  %v752 = vsub.f32 %v618, %v711
  %v753 = vsub.f32 %v623, %v713
  %v754 = vsub.f32 %v628, %v715
  %v755 = vsub.f32 %v633, %v717
  %v756 = vsub.f32 %v638, %v719
  %v757 = vsub.f32 %v643, %v721
  %v758 = vsub.f32 %v648, %v723
  %v759 = vsub.f32 %v653, %v725
  %v760 = vsub.f32 %v658, %v727
  %v761 = vsub.f32 %v663, %v729
  %v762 = vmul.f32 %v730, 1.442695
  %v763 = vpow.pop %v762
  %v764 = vmul.f32 %v731, 1.442695
  %v765 = vpow.pop %v764
  %v766 = vmul.f32 %v732, 1.442695
  %v767 = vpow.pop %v766
  %v768 = vmul.f32 %v733, 1.442695
  %v769 = vpow.pop %v768
  %v770 = vmul.f32 %v734, 1.442695
  %v771 = vpow.pop %v770
  %v772 = vmul.f32 %v735, 1.442695
  %v773 = vpow.pop %v772
  %v774 = vmul.f32 %v736, 1.442695
  %v775 = vpow.pop %v774
  %v776 = vmul.f32 %v737, 1.442695
  %v777 = vpow.pop %v776
  %v778 = vmul.f32 %v738, 1.442695
  %v779 = vpow.pop %v778
  %v780 = vmul.f32 %v739, 1.442695
  %v781 = vpow.pop %v780
  %v782 = vmul.f32 %v740, 1.442695
  %v783 = vpow.pop %v782
  %v784 = vmul.f32 %v741, 1.442695
  %v785 = vpow.pop %v784
  %v786 = vmul.f32 %v742, 1.442695
  %v787 = vpow.pop %v786
  %v788 = vmul.f32 %v743, 1.442695
  %v789 = vpow.pop %v788
  %v790 = vmul.f32 %v744, 1.442695
  %v791 = vpow.pop %v790
  %v792 = vmul.f32 %v745, 1.442695
  %v793 = vpow.pop %v792
  %v794 = vmul.f32 %v746, 1.442695
  %v795 = vpow.pop %v794
  %v796 = vmul.f32 %v747, 1.442695
  %v797 = vpow.pop %v796
  %v798 = vmul.f32 %v748, 1.442695
  %v799 = vpow.pop %v798
  %v800 = vmul.f32 %v749, 1.442695
  %v801 = vpow.pop %v800
  %v802 = vmul.f32 %v750, 1.442695
  %v803 = vpow.pop %v802
  %v804 = vmul.f32 %v751, 1.442695
  %v805 = vpow.pop %v804
  %v806 = vmul.f32 %v752, 1.442695
  %v807 = vpow.pop %v806
  %v808 = vmul.f32 %v753, 1.442695
  %v809 = vpow.pop %v808
  %v810 = vmul.f32 %v754, 1.442695
  %v811 = vpow.pop %v810
  %v812 = vmul.f32 %v755, 1.442695
  %v813 = vpow.pop %v812
  %v814 = vmul.f32 %v756, 1.442695
  %v815 = vpow.pop %v814
  %v816 = vmul.f32 %v757, 1.442695
  %v817 = vpow.pop %v816
  %v818 = vmul.f32 %v758, 1.442695
  %v819 = vpow.pop %v818
  %v820 = vmul.f32 %v759, 1.442695
  %v821 = vpow.pop %v820
  %v822 = vmul.f32 %v760, 1.442695
  %v823 = vpow.pop %v822
  %v824 = vmul.f32 %v761, 1.442695
  %v825 = vpow.pop %v824
  %826 = vadd.xlane.f32.xlu0 %v763
  %v827 = vpop.xlane.xlu0 %826
  %828 = vadd.xlane.f32.xlu0 %v765
  %v829 = vpop.xlane.xlu0 %828
  %830 = vadd.xlane.f32.xlu0 %v767
  %v831 = vpop.xlane.xlu0 %830
  %832 = vadd.xlane.f32.xlu0 %v769
  %v833 = vpop.xlane.xlu0 %832
  %834 = vadd.xlane.f32.xlu0 %v771
  %v835 = vpop.xlane.xlu0 %834
  %836 = vadd.xlane.f32.xlu0 %v773
  %v837 = vpop.xlane.xlu0 %836
  %838 = vadd.xlane.f32.xlu0 %v775
  %v839 = vpop.xlane.xlu0 %838
  %840 = vadd.xlane.f32.xlu0 %v777
  %v841 = vpop.xlane.xlu0 %840
  %842 = vadd.xlane.f32.xlu0 %v779
  %v843 = vpop.xlane.xlu0 %842
  %844 = vadd.xlane.f32.xlu0 %v781
  %v845 = vpop.xlane.xlu0 %844
  %846 = vadd.xlane.f32.xlu0 %v783
  %v847 = vpop.xlane.xlu0 %846
  %848 = vadd.xlane.f32.xlu0 %v785
  %v849 = vpop.xlane.xlu0 %848
  %850 = vadd.xlane.f32.xlu0 %v787
  %v851 = vpop.xlane.xlu0 %850
  %852 = vadd.xlane.f32.xlu0 %v789
  %v853 = vpop.xlane.xlu0 %852
  %854 = vadd.xlane.f32.xlu0 %v791
  %v855 = vpop.xlane.xlu0 %854
  %856 = vadd.xlane.f32.xlu0 %v793
  %v857 = vpop.xlane.xlu0 %856
  %858 = vadd.xlane.f32.xlu0 %v795
  %v859 = vpop.xlane.xlu0 %858
  %860 = vadd.xlane.f32.xlu0 %v797
  %v861 = vpop.xlane.xlu0 %860
  %862 = vadd.xlane.f32.xlu0 %v799
  %v863 = vpop.xlane.xlu0 %862
  %864 = vadd.xlane.f32.xlu0 %v801
  %v865 = vpop.xlane.xlu0 %864
  %866 = vadd.xlane.f32.xlu0 %v803
  %v867 = vpop.xlane.xlu0 %866
  %868 = vadd.xlane.f32.xlu0 %v805
  %v869 = vpop.xlane.xlu0 %868
  %870 = vadd.xlane.f32.xlu0 %v807
  %v871 = vpop.xlane.xlu0 %870
  %872 = vadd.xlane.f32.xlu0 %v809
  %v873 = vpop.xlane.xlu0 %872
  %874 = vadd.xlane.f32.xlu0 %v811
  %v875 = vpop.xlane.xlu0 %874
  %876 = vadd.xlane.f32.xlu0 %v813
  %v877 = vpop.xlane.xlu0 %876
  %878 = vadd.xlane.f32.xlu0 %v815
  %v879 = vpop.xlane.xlu0 %878
  %880 = vadd.xlane.f32.xlu0 %v817
  %v881 = vpop.xlane.xlu0 %880
  %882 = vadd.xlane.f32.xlu0 %v819
  %v883 = vpop.xlane.xlu0 %882
  %884 = vadd.xlane.f32.xlu0 %v821
  %v885 = vpop.xlane.xlu0 %884
  %886 = vadd.xlane.f32.xlu0 %v823
  %v887 = vpop.xlane.xlu0 %886
  %888 = vadd.xlane.f32.xlu0 %v825
  %v889 = vpop.xlane.xlu0 %888
  %v890 = vrcp.pop %v827
  %v891 = vmul.f32 %v763, %v890
  %v892 = vrcp.pop %v829
  %v893 = vmul.f32 %v765, %v892
  %v894 = vrcp.pop %v831
  %v895 = vmul.f32 %v767, %v894
  %v896 = vrcp.pop %v833
  %v897 = vmul.f32 %v769, %v896
  %v898 = vrcp.pop %v835
  %v899 = vmul.f32 %v771, %v898
  %v900 = vrcp.pop %v837
  %v901 = vmul.f32 %v773, %v900
  %v902 = vrcp.pop %v839
  %v903 = vmul.f32 %v775, %v902
  %v904 = vrcp.pop %v841
  %v905 = vmul.f32 %v777, %v904
  %v906 = vrcp.pop %v843
  %v907 = vmul.f32 %v779, %v906
  %v908 = vrcp.pop %v845
  %v909 = vmul.f32 %v781, %v908
  %v910 = vrcp.pop %v847
  %v911 = vmul.f32 %v783, %v910
  %v912 = vrcp.pop %v849
  %v913 = vmul.f32 %v785, %v912
  %v914 = vrcp.pop %v851
  %v915 = vmul.f32 %v787, %v914
  %v916 = vrcp.pop %v853
  %v917 = vmul.f32 %v789, %v916
  %v918 = vrcp.pop %v855
  %v919 = vmul.f32 %v791, %v918
  %v920 = vrcp.pop %v857
  %v921 = vmul.f32 %v793, %v920
  %v922 = vrcp.pop %v859
  %v923 = vmul.f32 %v795, %v922
  %v924 = vrcp.pop %v861
  %v925 = vmul.f32 %v797, %v924
  %v926 = vrcp.pop %v863
  %v927 = vmul.f32 %v799, %v926
  %v928 = vrcp.pop %v865
  %v929 = vmul.f32 %v801, %v928
  %v930 = vrcp.pop %v867
  %v931 = vmul.f32 %v803, %v930
  %v932 = vrcp.pop %v869
  %v933 = vmul.f32 %v805, %v932
  %v934 = vrcp.pop %v871
  %v935 = vmul.f32 %v807, %v934
  %v936 = vrcp.pop %v873
  %v937 = vmul.f32 %v809, %v936
  %v938 = vrcp.pop %v875
  %v939 = vmul.f32 %v811, %v938
  %v940 = vrcp.pop %v877
  %v941 = vmul.f32 %v813, %v940
  %v942 = vrcp.pop %v879
  %v943 = vmul.f32 %v815, %v942
  %v944 = vrcp.pop %v881
  %v945 = vmul.f32 %v817, %v944
  %v946 = vrcp.pop %v883
  %v947 = vmul.f32 %v819, %v946
  %v948 = vrcp.pop %v885
  %v949 = vmul.f32 %v821, %v948
  %v950 = vrcp.pop %v887
  %v951 = vmul.f32 %v823, %v950
  %v952 = vrcp.pop %v889
  %v953 = vmul.f32 %v825, %v952
  %vm954 = vcmask 15360
  %955 = vst.msk [vmem:[%s5] sm:$0xff] %vm954, %v891
  %956 = vst.msk [vmem:[%s5 + $0x8] sm:$0xff] %vm954, %v893
  %957 = vst.msk [vmem:[%s5 + $0x10] sm:$0xff] %vm954, %v895
  %958 = vst.msk [vmem:[%s5 + $0x18] sm:$0xff] %vm954, %v897
  %959 = vst.msk [vmem:[%s5 + $0x20] sm:$0xff] %vm954, %v899
  %960 = vst.msk [vmem:[%s5 + $0x28] sm:$0xff] %vm954, %v901
  %961 = vst.msk [vmem:[%s5 + $0x30] sm:$0xff] %vm954, %v903
  %962 = vst.msk [vmem:[%s5 + $0x38] sm:$0xff] %vm954, %v905
  %963 = vst.msk [vmem:[%s5 + $0x40] sm:$0xff] %vm954, %v907
  %964 = vst.msk [vmem:[%s5 + $0x48] sm:$0xff] %vm954, %v909
  %965 = vst.msk [vmem:[%s5 + $0x50] sm:$0xff] %vm954, %v911
  %966 = vst.msk [vmem:[%s5 + $0x58] sm:$0xff] %vm954, %v913
  %967 = vst.msk [vmem:[%s5 + $0x60] sm:$0xff] %vm954, %v915
  %968 = vst.msk [vmem:[%s5 + $0x68] sm:$0xff] %vm954, %v917
  %969 = vst.msk [vmem:[%s5 + $0x70] sm:$0xff] %vm954, %v919
  %970 = vst.msk [vmem:[%s5 + $0x78] sm:$0xff] %vm954, %v921
  %971 = vst.msk [vmem:[%s5 + $0x80] sm:$0xff] %vm954, %v923
  %972 = vst.msk [vmem:[%s5 + $0x88] sm:$0xff] %vm954, %v925
  %973 = vst.msk [vmem:[%s5 + $0x90] sm:$0xff] %vm954, %v927
  %974 = vst.msk [vmem:[%s5 + $0x98] sm:$0xff] %vm954, %v929
  %975 = vst.msk [vmem:[%s5 + $0xa0] sm:$0xff] %vm954, %v931
  %976 = vst.msk [vmem:[%s5 + $0xa8] sm:$0xff] %vm954, %v933
  %977 = vst.msk [vmem:[%s5 + $0xb0] sm:$0xff] %vm954, %v935
  %978 = vst.msk [vmem:[%s5 + $0xb8] sm:$0xff] %vm954, %v937
  %979 = vst.msk [vmem:[%s5 + $0xc0] sm:$0xff] %vm954, %v939
  %980 = vst.msk [vmem:[%s5 + $0xc8] sm:$0xff] %vm954, %v941
  %981 = vst.msk [vmem:[%s5 + $0xd0] sm:$0xff] %vm954, %v943
  %982 = vst.msk [vmem:[%s5 + $0xd8] sm:$0xff] %vm954, %v945
  %983 = vst.msk [vmem:[%s5 + $0xe0] sm:$0xff] %vm954, %v947
  %984 = vst.msk [vmem:[%s5 + $0xe8] sm:$0xff] %vm954, %v949
  %985 = vst.msk [vmem:[%s5 + $0xf0] sm:$0xff] %vm954, %v951
  %986 = vst.msk [vmem:[%s5 + $0xf8] sm:$0xff] %vm954, %v953
  // Predicated region
  $region22: #{_policy_net_forward.1} parent=0 // pred_check
    _
  $region23: #{_policy_net_forward.1} parent=0 // pred_check_branch
    %988 = sbr.rel (0) target = $region25
  $region24: #{_policy_net_forward.1} parent=0 // pred_region
    _
  $region25: #{_policy_net_forward.1} parent=0 // pred_fallthru
    _
  // Predicated region
  $region26: #{_policy_net_forward.1} parent=0 // pred_check
    _
  $region27: #{_policy_net_forward.1} parent=0 // pred_check_branch
    %990 = sbr.rel (0) target = $region29
  $region28: #{_policy_net_forward.1} parent=0 // pred_region
    _
  $region29: #{_policy_net_forward.1} parent=0 // pred_fallthru
    _

</llo_original>
